<compile_context>
chip_gen: v7x
topology: tpu7x:2x2x1
jax: 0.10.0
libtpu: 0.0.40
codegen_flags: <defaults>
</compile_context>

<pallas_src>
import math
from functools import partial

import numpy as np

import jax
import jax.numpy as jnp
from jax.experimental import pallas as pl
from jax.experimental.pallas import tpu as pltpu

LANES = 128
ACC_SUBLANES = 8


def _round_up(x, m):
    return (x + m - 1) // m * m


def _choose_tile_rows(n_rows):
    """Rows-of-128 per grid step for the single conf plane (~4 MiB f32/step)."""
    target_rows = (4 * 1024 * 1024) // (LANES * 4)
    tr = min(target_rows, _round_up(n_rows, ACC_SUBLANES))
    return max(ACC_SUBLANES, (tr // ACC_SUBLANES) * ACC_SUBLANES)


# ----------------------- Pallas kernel (hot path) ---------------------------
def _yolo_loss_kernel(conf_ref, pos_pred_ref, pos_tgt_ref, vz_ref,
                      out_ref, acc_ref, *, n_valid, classes_num):
    """conf_ref    : (tile_rows, 128) conf logits (native dtype), pad = -1e4
       pos_pred_ref: (P_cap, 5+C) f32 gathered pred rows at positive cells
       pos_tgt_ref : (P_cap, 5+C) f32 [valid, tx, ty, tw, th, cls_onehot...]
       vz_ref      : (2, V_cap)  f32 [conf logit at void==0 cells; valid flag]
       out_ref     : (8,) f32 in SMEM
       acc_ref     : (8, 128) f32 VMEM accumulator (persists across the grid)."""
    pid = pl.program_id(0)

    @pl.when(pid == 0)
    def _init():
        acc_ref[...] = jnp.zeros_like(acc_ref)

    def softplus(z):
        # stable log(1 + exp(z)); argument of log stays in [1, 2]
        return jnp.maximum(z, 0.0) + jnp.log(1.0 + jnp.exp(-jnp.abs(z)))

    def bce_logits(z, t):
        # == BCE(sigmoid(z), t); differs from torch's clamp(log, -100) only
        # when sigmoid fully saturates (this form is more accurate).
        return softplus(z) - z * t

    # Dense part: sum softplus(conf logit) over every cell of this tile,
    # reduced to one (8,128) vreg with pure VPU adds before accumulating.
    z = conf_ref[...].astype(jnp.float32)
    tr = z.shape[0]
    part = softplus(z).reshape(tr // ACC_SUBLANES, ACC_SUBLANES, LANES).sum(axis=0)
    acc_ref[...] += part

    @pl.when(pid == pl.num_programs(0) - 1)
    def _finalize():
        s_all = jnp.sum(acc_ref[...])            # one cross-lane reduce

        pp = pos_pred_ref[...].astype(jnp.float32)   # (P, 5+C)
        pt = pos_tgt_ref[...]                        # (P, 5+C)
        valid = pt[:, 0:1]                           # (P, 1)
        zx, zy = pp[:, 0:1], pp[:, 1:2]
        w_, h_ = pp[:, 2:3], pp[:, 3:4]
        zc = pp[:, 4:5]
        tx, ty = pt[:, 1:2], pt[:, 2:3]
        tw, th = pt[:, 3:4], pt[:, 4:5]

        sum_x = jnp.sum(valid * bce_logits(zx, tx))
        sum_y = jnp.sum(valid * bce_logits(zy, ty))
        sum_w = jnp.sum(valid * (w_ - tw) ** 2)
        sum_h = jnp.sum(valid * (h_ - th) ** 2)
        sum_conf_obj = jnp.sum(valid * softplus(-zc))      # bce(sigmoid(z), 1)
        sum_cls = jnp.sum(valid * bce_logits(pp[:, 5:5 + classes_num],
                                             pt[:, 5:5 + classes_num]))

        # counts are integer-valued; max(.,1) only guards the degenerate
        # "no positive / no void cell" batch (reference would produce NaN).
        n_mask = jnp.maximum(jnp.sum(valid), 1.0)

        vz_z = vz_ref[0:1, :].astype(jnp.float32)
        vz_v = vz_ref[1:2, :]
        s_void = s_all - jnp.sum(vz_v * softplus(vz_z))    # sum over void==1 cells
        n_void = jnp.maximum(jnp.float32(n_valid) - jnp.sum(vz_v), 1.0)

        n_f = jnp.float32(n_valid)
        loss_x = sum_x / n_f / n_mask
        loss_y = sum_y / n_f / n_mask
        loss_w = sum_w / n_f / n_mask
        loss_h = sum_h / n_f / n_mask
        loss_conf = sum_conf_obj / n_f / n_mask + 0.5 * s_void / n_f / n_void
        # reference: BCE mean over the (n_mask, C) selected elements, then /n_mask
        loss_cls = sum_cls / (n_mask * jnp.float32(classes_num)) / n_mask
        loss = ((loss_x + loss_y) * 2.5 + (loss_w + loss_h) * 2.5
                + loss_conf * 1.0 + loss_cls * 1.0)

        out_ref[0] = loss
        out_ref[1] = loss_x
        out_ref[2] = loss_y
        out_ref[3] = loss_w
        out_ref[4] = loss_h
        out_ref[5] = loss_conf
        out_ref[6] = loss_cls
        out_ref[7] = jnp.float32(0.0)


@partial(jax.jit, static_argnames=("anchor_num", "classes_num"))
def yolo_loss_forward(inp, pos_base, pos_tgt, vz_idx, vz_valid, *,
                      anchor_num, classes_num):
    """inp: (B, A*(5+C), H, W) float (native dtype kept for the dense DMA).
       pos_base: (P_cap,) int32 flat index of attr-0 for each positive cell.
       pos_tgt : (P_cap, 5+C) f32 [valid, tx, ty, tw, th, cls_onehot...].
       vz_idx  : (V_cap,) int32 flat index of the conf attr at void==0 cells.
       vz_valid: (V_cap,) f32 validity flags.
       Returns (8,) f32: [loss, loss_x, loss_y, loss_w, loss_h, loss_conf, loss_cls, 0]."""
    assert classes_num >= 1
    b, _, h, w = inp.shape
    attrs = classes_num + 5
    hw = h * w
    n = b * anchor_num * hw

    inp_flat = inp.reshape(-1)

    # tiny gathers (few dozen elements) for the mask-sparse terms
    attr_off = (jnp.arange(attrs, dtype=jnp.int32) * hw)[None, :]
    pos_pred = jnp.take(inp_flat, pos_base[:, None] + attr_off).astype(jnp.float32)
    vz_conf = jnp.take(inp_flat, vz_idx).astype(jnp.float32)
    vz_pack = jnp.stack([vz_conf, vz_valid.astype(jnp.float32)], axis=0)

    # dense conf-logit plane only (1/(5+C) of the conv output), lane-dense
    conf = inp.reshape(b, anchor_num, attrs, h, w)[:, :, 4, :, :].reshape(-1)
    n_rows = pl.cdiv(n, LANES)
    tile_rows = _choose_tile_rows(n_rows)
    rows_pad = _round_up(n_rows, tile_rows)
    # pad value -1e4 -> softplus == 0 exactly, so padding adds nothing
    conf = jnp.pad(conf, (0, rows_pad * LANES - n), constant_values=-1e4)
    conf = conf.reshape(rows_pad, LANES)

    p_cap, t_cols = pos_tgt.shape
    v_cap = vz_pack.shape[1]

    kernel = partial(_yolo_loss_kernel, n_valid=n, classes_num=classes_num)
    return pl.pallas_call(
        kernel,
        out_shape=jax.ShapeDtypeStruct((8,), jnp.float32),
        grid=(rows_pad // tile_rows,),
        in_specs=[
            pl.BlockSpec((tile_rows, LANES), lambda i: (i, 0)),
            pl.BlockSpec((p_cap, attrs), lambda i: (0, 0)),   # resident, copied once
            pl.BlockSpec((p_cap, t_cols), lambda i: (0, 0)),
            pl.BlockSpec((2, v_cap), lambda i: (0, 0)),
        ],
        out_specs=pl.BlockSpec(memory_space=pltpu.MemorySpace.SMEM),
        scratch_shapes=[pltpu.VMEM((ACC_SUBLANES, LANES), jnp.float32)],
        compiler_params=pltpu.CompilerParams(
            dimension_semantics=("arbitrary",),   # reduction axis (carried acc)
            vmem_limit_bytes=32 * 1024 * 1024,
        ),
    )(conf, pos_pred, pos_tgt.astype(jnp.float32), vz_pack)


# ------------------- host-side glue (target parsing etc.) -------------------
def _bbox_iou_np(box1, box2):
    b1_x1, b1_y1, b1_x2, b1_y2 = box1[:, 0], box1[:, 1], box1[:, 2], box1[:, 3]
    b2_x1, b2_y1, b2_x2, b2_y2 = box2[:, 0], box2[:, 1], box2[:, 2], box2[:, 3]
    ix1 = np.maximum(b1_x1, b2_x1)
    iy1 = np.maximum(b1_y1, b2_y1)
    ix2 = np.minimum(b1_x2, b2_x2)
    iy2 = np.minimum(b1_y2, b2_y2)
    inter = np.clip(ix2 - ix1 + 1, 0, None) * np.clip(iy2 - iy1 + 1, 0, None)
    a1 = (b1_x2 - b1_x1 + 1) * (b1_y2 - b1_y1 + 1)
    a2 = (b2_x2 - b2_x1 + 1) * (b2_y2 - b2_y1 + 1)
    return inter / (a1 + a2 - inter + 1e-16)


def parse_target_np(target, anchors, input_w, input_h, ignore_th, anchor_num, classes_num):
    # Faithful NumPy port of YOLOLoss.parse_target (data-dependent per-object
    # scatter + anchor-IoU argmax, done host-side — not a TPU hot path).
    batch_size = len(target)
    shape = (batch_size, anchor_num, input_h, input_w)
    mask = np.zeros(shape, np.float32)
    void_mask = np.ones(shape, np.float32)
    tx = np.zeros(shape, np.float32)
    ty = np.zeros(shape, np.float32)
    tw = np.zeros(shape, np.float32)
    th = np.zeros(shape, np.float32)
    tconf = np.zeros(shape, np.float32)
    tcls = np.zeros(shape + (classes_num,), np.float32)
    for b in range(batch_size):
        for obj in range(target[b].shape[0]):
            if target[b][obj].sum() == 0:
                continue
            gt_x = target[b][obj, 1] * input_w
            gt_y = target[b][obj, 2] * input_h
            gt_w = target[b][obj, 3] * input_w
            gt_h = target[b][obj, 4] * input_h
            gt_i = int(gt_x)
            gt_j = int(gt_y)
            gt_box = np.array([[0.0, 0.0, gt_w, gt_h]], np.float32)
            anchor_shapes = np.concatenate(
                (np.zeros((anchor_num, 2)), np.array(anchors)), axis=1).astype(np.float32)
            ious = _bbox_iou_np(gt_box, anchor_shapes)
            void_mask[b, ious > ignore_th, gt_j, gt_i] = 0
            best = int(np.argmax(ious))
            if gt_j < input_h and gt_i < input_w:
                mask[b, best, gt_j, gt_i] = 1
                tx[b, best, gt_j, gt_i] = gt_x - gt_i
                ty[b, best, gt_j, gt_i] = gt_y - gt_j
                tw[b, best, gt_j, gt_i] = math.log(gt_w / anchors[best][0] + 1e-16)
                th[b, best, gt_j, gt_i] = math.log(gt_h / anchors[best][1] + 1e-16)
                tconf[b, best, gt_j, gt_i] = 1
                tcls[b, best, gt_j, gt_i, int(target[b][obj, 0])] = 1
    return mask, void_mask, tx, ty, tw, th, tconf, tcls


def _pack_sparse_np(mask, void_mask, tx, ty, tw, th, tcls,
                    anchor_num, classes_num, input_h, input_w):
    """Extract the (few) positive / void==0 cells from the dense parse output.
       Capacities are rounded up to multiples of 8 (reduces jit recompiles);
       padded slots carry valid=0 and index 0 (always in-bounds)."""
    attrs = classes_num + 5
    hw = input_h * input_w

    pos = np.argwhere(mask > 0.5)                     # (P, 4): b, a, j, i
    p_num = pos.shape[0]
    p_cap = max(8, _round_up(max(p_num, 1), 8))
    pos_base = np.zeros((p_cap,), np.int32)
    pos_tgt = np.zeros((p_cap, 5 + classes_num), np.float32)
    if p_num:
        b_, a_, j_, i_ = pos[:, 0], pos[:, 1], pos[:, 2], pos[:, 3]
        pos_base[:p_num] = ((b_ * anchor_num + a_) * attrs) * hw + j_ * input_w + i_
        pos_tgt[:p_num, 0] = 1.0
        pos_tgt[:p_num, 1] = tx[b_, a_, j_, i_]
        pos_tgt[:p_num, 2] = ty[b_, a_, j_, i_]
        pos_tgt[:p_num, 3] = tw[b_, a_, j_, i_]
        pos_tgt[:p_num, 4] = th[b_, a_, j_, i_]
        pos_tgt[:p_num, 5:] = tcls[b_, a_, j_, i_, :]

    vz = np.argwhere(void_mask < 0.5)                 # cells where void == 0
    v_num = vz.shape[0]
    v_cap = max(8, _round_up(max(v_num, 1), 8))
    vz_idx = np.zeros((v_cap,), np.int32)
    vz_valid = np.zeros((v_cap,), np.float32)
    if v_num:
        b_, a_, j_, i_ = vz[:, 0], vz[:, 1], vz[:, 2], vz[:, 3]
        vz_idx[:v_num] = ((b_ * anchor_num + a_) * attrs + 4) * hw + j_ * input_w + i_
        vz_valid[:v_num] = 1.0

    return pos_base, pos_tgt, vz_idx, vz_valid


class YOLOLossPallas:
    def __init__(self, anchors, classes_num, img_size):
        assert classes_num >= 1
        self._anchors = anchors
        self._anchor_num = len(anchors)
        self._classes_num = classes_num
        self._img_size = img_size
        self._ignore_th = 0.5

    def _parse(self, target, input_h, input_w):
        stride_h = self._img_size[1] / input_h
        stride_w = self._img_size[0] / input_w
        # same (anchor_height, anchor_width) unpacking convention as reference
        scaled_anchors = [(aw / stride_w, ah / stride_h) for ah, aw in self._anchors]
        return parse_target_np(target, scaled_anchors, input_w, input_h,
                               self._ignore_th, self._anchor_num, self._classes_num)

    def __call__(self, inp, target):
        _, _, h, w = inp.shape
        mask, void_mask, tx, ty, tw, th, _tconf, tcls = self._parse(target, h, w)
        pos_base, pos_tgt, vz_idx, vz_valid = _pack_sparse_np(
            mask, void_mask, tx, ty, tw, th, tcls,
            self._anchor_num, self._classes_num, h, w)
        losses = yolo_loss_forward(
            jnp.asarray(inp), jnp.asarray(pos_base), jnp.asarray(pos_tgt),
            jnp.asarray(vz_idx), jnp.asarray(vz_valid),
            anchor_num=self._anchor_num, classes_num=self._classes_num)
        host = np.asarray(jax.device_get(losses))     # single host sync
        return (losses[0], float(host[1]), float(host[2]), float(host[3]),
                float(host[4]), float(host[5]), float(host[6]))


# --------------------- float64 NumPy reference (for check) ------------------
def _reference_loss_np(inp, tgt_flat, anchor_num, classes_num):
    b, _, h, w = inp.shape
    attrs = classes_num + 5
    p = np.asarray(inp, np.float64).reshape(b, anchor_num, attrs, h, w)
    p = p.transpose(2, 0, 1, 3, 4).reshape(attrs, -1)
    t = np.asarray(tgt_flat, np.float64)

    def sig(z):
        return 1.0 / (1.0 + np.exp(-z))

    def bce(pv, tv):
        lp = np.maximum(np.log(np.maximum(pv, 1e-300)), -100.0)
        l1p = np.maximum(np.log(np.maximum(1.0 - pv, 1e-300)), -100.0)
        return -(tv * lp + (1.0 - tv) * l1p)

    x, y = sig(p[0]), sig(p[1])
    wv, hv = p[2], p[3]
    conf = sig(p[4])
    cls = sig(p[5:])
    mask, void = t[0], t[1]
    tx, ty, tw, th = t[2], t[3], t[4], t[5]
    tcls = t[6:]
    n_mask, n_void = mask.sum(), void.sum()
    loss_x = bce(x * mask, tx * mask).mean() / n_mask
    loss_y = bce(y * mask, ty * mask).mean() / n_mask
    loss_w = ((wv * mask - tw * mask) ** 2).mean() / n_mask
    loss_h = ((hv * mask - th * mask) ** 2).mean() / n_mask
    loss_conf = (bce(conf * mask, mask).mean() / n_mask
                 + 0.5 * bce(conf * void, 0.0 * void).mean() / n_void)
    sel = mask == 1
    loss_cls = bce(cls[:, sel], tcls[:, sel]).mean() / n_mask
    loss = (loss_x + loss_y) * 2.5 + (loss_w + loss_h) * 2.5 + loss_conf + loss_cls
    return np.array([loss, loss_x, loss_y, loss_w, loss_h, loss_conf, loss_cls])


if __name__ == "__main__":
    # small deterministic setup
    anchors = [(10.0, 13.0), (16.0, 30.0), (33.0, 23.0)]   # (h, w) pairs
    classes_num = 3
    img_size = (128, 128)
    B, A, H, W = 2, len(anchors), 16, 16
    C_in = A * (classes_num + 5)                            # 24

    key = jax.random.PRNGKey(0)
    x = jax.random.normal(key, (B, C_in, H, W), dtype=jnp.float32)

    # per-image list of [class, cx, cy, w, h] (normalized), as the reference expects
    target = [
        np.array([[0, 0.30, 0.40, 0.20, 0.30],
                  [1, 0.70, 0.60, 0.40, 0.20]], dtype=np.float32),
        np.array([[2, 0.50, 0.50, 0.60, 0.50],
                  [0, 0.00, 0.00, 0.00, 0.00]], dtype=np.float32),  # padding row -> skipped
    ]

    loss_mod = YOLOLossPallas(anchors, classes_num, img_size)
    out = loss_mod(x, target)
    jax.block_until_ready(out[0])

    # sanity check against a float64 NumPy port of the PyTorch reference
    mask, void_mask, tx, ty, tw, th, _tc, tcls = loss_mod._parse(target, H, W)
    tgt_slab = np.concatenate(
        [mask[None], void_mask[None], tx[None], ty[None], tw[None], th[None],
         np.moveaxis(tcls, -1, 0)], axis=0).reshape(6 + classes_num, -1)
    ref = _reference_loss_np(np.asarray(x), tgt_slab, A, classes_num)
    got = np.array([float(out[0])] + list(out[1:]), dtype=np.float64)
    np.testing.assert_allclose(got, ref, rtol=2e-3, atol=1e-6)

    print("KERNEL_OK")
</pallas_src>

<mosaic_0001>
module attributes {stable_mosaic.version = 11 : i64} {
  func.func @_yolo_loss_kernel(%arg0: i32, %arg1: memref<16x128xf32, #tpu.memory_space<vmem>>, %arg2: memref<8x8xf32, #tpu.memory_space<vmem>>, %arg3: memref<8x8xf32, #tpu.memory_space<vmem>>, %arg4: memref<2x8xf32, #tpu.memory_space<vmem>>, %arg5: memref<8xf32, #tpu.memory_space<smem>>, %arg6: memref<8x128xf32, #tpu.memory_space<vmem>>) attributes {dimension_semantics = [#tpu.dimension_semantics<arbitrary>], iteration_bounds = array<i64: 1>, scalar_prefetch = 0 : i64, scratch_operands = 1 : i64, tpu.core_type = #tpu.core_type<tc>, window_params = [{transform_indices = @transform_0, window_bounds = array<i64: 16, 128>}, {pipeline_mode = #tpu.pipeline_mode<synchronous>, transform_indices = @transform_1, window_bounds = array<i64: 8, 8>}, {pipeline_mode = #tpu.pipeline_mode<synchronous>, transform_indices = @transform_2, window_bounds = array<i64: 8, 8>}, {pipeline_mode = #tpu.pipeline_mode<synchronous>, transform_indices = @transform_3, window_bounds = array<i64: 2, 8>}, {transform_indices = @transform_4, window_bounds = array<i64: 8>}]} {
    %c0_i32 = arith.constant 0 : i32
    %0 = arith.cmpi eq, %arg0, %c0_i32 : i32
    %1 = arith.extui %0 : i1 to i32
    %c0_i32_0 = arith.constant 0 : i32
    %2 = arith.cmpi ne, %1, %c0_i32_0 : i32
    scf.if %2 {
      %cst_11 = arith.constant 0.000000e+00 : f32
      %22 = vector.broadcast %cst_11 : f32 to vector<8x128xf32>
      %c0_12 = arith.constant 0 : index
      %c0_13 = arith.constant 0 : index
      %23 = vector.load %arg6[%c0_12, %c0_13] : memref<8x128xf32, #tpu.memory_space<vmem>>, vector<8x128xf32>
      tpu.vector_store %arg6[%c0_12, %c0_13], %22 {strides = array<i32>} : memref<8x128xf32, #tpu.memory_space<vmem>>, vector<8x128xf32>,
    } else {
    }
    %c0 = arith.constant 0 : index
    %c0_1 = arith.constant 0 : index
    %3 = vector.load %arg1[%c0, %c0_1] : memref<16x128xf32, #tpu.memory_space<vmem>>, vector<16x128xf32>
    %cst = arith.constant 0.000000e+00 : f32
    %4 = vector.broadcast %cst : f32 to vector<16x128xf32>
    %5 = arith.maximumf %3, %4 : vector<16x128xf32>
    %6 = math.absf %3 : vector<16x128xf32>
    %cst_2 = arith.constant 0.000000e+00 : f32
    %7 = vector.broadcast %cst_2 : f32 to vector<16x128xf32>
    %8 = arith.subf %7, %6 : vector<16x128xf32>
    %9 = math.exp %8 : vector<16x128xf32>
    %cst_3 = arith.constant 1.000000e+00 : f32
    %10 = vector.broadcast %cst_3 : f32 to vector<16x128xf32>
    %11 = arith.addf %10, %9 : vector<16x128xf32>
    %12 = math.log %11 : vector<16x128xf32>
    %13 = arith.addf %5, %12 : vector<16x128xf32>
    %14 = vector.shape_cast %13 : vector<16x128xf32> to vector<2x8x128xf32>
    %cst_4 = arith.constant dense<0.000000e+00> : vector<8x128xf32>
    %15 = vector.multi_reduction <add>, %14, %cst_4 [0] : vector<2x8x128xf32> to vector<8x128xf32>
    %c0_5 = arith.constant 0 : index
    %c0_6 = arith.constant 0 : index
    %16 = vector.load %arg6[%c0_5, %c0_6] : memref<8x128xf32, #tpu.memory_space<vmem>>, vector<8x128xf32>
    %17 = arith.addf %16, %15 : vector<8x128xf32>
    %c0_7 = arith.constant 0 : index
    %c0_8 = arith.constant 0 : index
    %18 = vector.load %arg6[%c0_7, %c0_8] : memref<8x128xf32, #tpu.memory_space<vmem>>, vector<8x128xf32>
    tpu.vector_store %arg6[%c0_7, %c0_8], %17 {strides = array<i32>} : memref<8x128xf32, #tpu.memory_space<vmem>>, vector<8x128xf32>,
    %c0_i32_9 = arith.constant 0 : i32
    %19 = arith.cmpi eq, %arg0, %c0_i32_9 : i32
    %20 = arith.extui %19 : i1 to i32
    %c0_i32_10 = arith.constant 0 : i32
    %21 = arith.cmpi ne, %20, %c0_i32_10 : i32
    scf.if %21 {
      %c0_11 = arith.constant 0 : index
      %c0_12 = arith.constant 0 : index
      %22 = vector.load %arg6[%c0_11, %c0_12] : memref<8x128xf32, #tpu.memory_space<vmem>>, vector<8x128xf32>
      %23 = vector.shape_cast %22 : vector<8x128xf32> to vector<1x8x128xf32>
      %cst_13 = arith.constant dense<0.000000e+00> : vector<1xf32>
      %24 = vector.multi_reduction <add>, %23, %cst_13 [1, 2] : vector<1x8x128xf32> to vector<1xf32>
      %25 = vector.shape_cast %24 : vector<1xf32> to vector<1x1x1xf32>
      %26 = vector.extract %25[0, 0, 0] : f32 from vector<1x1x1xf32>
      %c0_14 = arith.constant 0 : index
      %c0_15 = arith.constant 0 : index
      %27 = vector.load %arg2[%c0_14, %c0_15] : memref<8x8xf32, #tpu.memory_space<vmem>>, vector<8x8xf32>
      %c0_16 = arith.constant 0 : index
      %c0_17 = arith.constant 0 : index
      %28 = vector.load %arg3[%c0_16, %c0_17] : memref<8x8xf32, #tpu.memory_space<vmem>>, vector<8x8xf32>
      %29 = vector.extract_strided_slice %28 {offsets = [0, 0], sizes = [8, 1], strides = [1, 1]} : vector<8x8xf32> to vector<8x1xf32>
      %30 = vector.extract_strided_slice %27 {offsets = [0, 0], sizes = [8, 1], strides = [1, 1]} : vector<8x8xf32> to vector<8x1xf32>
      %31 = vector.extract_strided_slice %27 {offsets = [0, 1], sizes = [8, 1], strides = [1, 1]} : vector<8x8xf32> to vector<8x1xf32>
      %32 = vector.extract_strided_slice %27 {offsets = [0, 2], sizes = [8, 1], strides = [1, 1]} : vector<8x8xf32> to vector<8x1xf32>
      %33 = vector.extract_strided_slice %27 {offsets = [0, 3], sizes = [8, 1], strides = [1, 1]} : vector<8x8xf32> to vector<8x1xf32>
      %34 = vector.extract_strided_slice %27 {offsets = [0, 4], sizes = [8, 1], strides = [1, 1]} : vector<8x8xf32> to vector<8x1xf32>
      %35 = vector.extract_strided_slice %28 {offsets = [0, 1], sizes = [8, 1], strides = [1, 1]} : vector<8x8xf32> to vector<8x1xf32>
      %36 = vector.extract_strided_slice %28 {offsets = [0, 2], sizes = [8, 1], strides = [1, 1]} : vector<8x8xf32> to vector<8x1xf32>
      %37 = vector.extract_strided_slice %28 {offsets = [0, 3], sizes = [8, 1], strides = [1, 1]} : vector<8x8xf32> to vector<8x1xf32>
      %38 = vector.extract_strided_slice %28 {offsets = [0, 4], sizes = [8, 1], strides = [1, 1]} : vector<8x8xf32> to vector<8x1xf32>
      %cst_18 = arith.constant 0.000000e+00 : f32
      %39 = vector.broadcast %cst_18 : f32 to vector<8x1xf32>
      %40 = arith.maximumf %30, %39 : vector<8x1xf32>
      %41 = math.absf %30 : vector<8x1xf32>
      %cst_19 = arith.constant 0.000000e+00 : f32
      %42 = vector.broadcast %cst_19 : f32 to vector<8x1xf32>
      %43 = arith.subf %42, %41 : vector<8x1xf32>
      %44 = math.exp %43 : vector<8x1xf32>
      %cst_20 = arith.constant 1.000000e+00 : f32
      %45 = vector.broadcast %cst_20 : f32 to vector<8x1xf32>
      %46 = arith.addf %45, %44 : vector<8x1xf32>
      %47 = math.log %46 : vector<8x1xf32>
      %48 = arith.addf %40, %47 : vector<8x1xf32>
      %49 = arith.mulf %30, %35 : vector<8x1xf32>
      %50 = arith.subf %48, %49 : vector<8x1xf32>
      %51 = arith.mulf %29, %50 : vector<8x1xf32>
      %52 = vector.shape_cast %51 : vector<8x1xf32> to vector<1x8x1xf32>
      %cst_21 = arith.constant dense<0.000000e+00> : vector<1xf32>
      %53 = vector.multi_reduction <add>, %52, %cst_21 [1, 2] : vector<1x8x1xf32> to vector<1xf32>
      %54 = vector.shape_cast %53 : vector<1xf32> to vector<1x1x1xf32>
      %55 = vector.extract %54[0, 0, 0] : f32 from vector<1x1x1xf32>
      %cst_22 = arith.constant 0.000000e+00 : f32
      %56 = vector.broadcast %cst_22 : f32 to vector<8x1xf32>
      %57 = arith.maximumf %31, %56 : vector<8x1xf32>
      %58 = math.absf %31 : vector<8x1xf32>
      %cst_23 = arith.constant 0.000000e+00 : f32
      %59 = vector.broadcast %cst_23 : f32 to vector<8x1xf32>
      %60 = arith.subf %59, %58 : vector<8x1xf32>
      %61 = math.exp %60 : vector<8x1xf32>
      %cst_24 = arith.constant 1.000000e+00 : f32
      %62 = vector.broadcast %cst_24 : f32 to vector<8x1xf32>
      %63 = arith.addf %62, %61 : vector<8x1xf32>
      %64 = math.log %63 : vector<8x1xf32>
      %65 = arith.addf %57, %64 : vector<8x1xf32>
      %66 = arith.mulf %31, %36 : vector<8x1xf32>
      %67 = arith.subf %65, %66 : vector<8x1xf32>
      %68 = arith.mulf %29, %67 : vector<8x1xf32>
      %69 = vector.shape_cast %68 : vector<8x1xf32> to vector<1x8x1xf32>
      %cst_25 = arith.constant dense<0.000000e+00> : vector<1xf32>
      %70 = vector.multi_reduction <add>, %69, %cst_25 [1, 2] : vector<1x8x1xf32> to vector<1xf32>
      %71 = vector.shape_cast %70 : vector<1xf32> to vector<1x1x1xf32>
      %72 = vector.extract %71[0, 0, 0] : f32 from vector<1x1x1xf32>
      %73 = arith.subf %32, %37 : vector<8x1xf32>
      %74 = arith.mulf %73, %73 : vector<8x1xf32>
      %75 = arith.mulf %29, %74 : vector<8x1xf32>
      %76 = vector.shape_cast %75 : vector<8x1xf32> to vector<1x8x1xf32>
      %cst_26 = arith.constant dense<0.000000e+00> : vector<1xf32>
      %77 = vector.multi_reduction <add>, %76, %cst_26 [1, 2] : vector<1x8x1xf32> to vector<1xf32>
      %78 = vector.shape_cast %77 : vector<1xf32> to vector<1x1x1xf32>
      %79 = vector.extract %78[0, 0, 0] : f32 from vector<1x1x1xf32>
      %80 = arith.subf %33, %38 : vector<8x1xf32>
      %81 = arith.mulf %80, %80 : vector<8x1xf32>
      %82 = arith.mulf %29, %81 : vector<8x1xf32>
      %83 = vector.shape_cast %82 : vector<8x1xf32> to vector<1x8x1xf32>
      %cst_27 = arith.constant dense<0.000000e+00> : vector<1xf32>
      %84 = vector.multi_reduction <add>, %83, %cst_27 [1, 2] : vector<1x8x1xf32> to vector<1xf32>
      %85 = vector.shape_cast %84 : vector<1xf32> to vector<1x1x1xf32>
      %86 = vector.extract %85[0, 0, 0] : f32 from vector<1x1x1xf32>
      %cst_28 = arith.constant 0.000000e+00 : f32
      %87 = vector.broadcast %cst_28 : f32 to vector<8x1xf32>
      %88 = arith.subf %87, %34 : vector<8x1xf32>
      %cst_29 = arith.constant 0.000000e+00 : f32
      %89 = vector.broadcast %cst_29 : f32 to vector<8x1xf32>
      %90 = arith.maximumf %88, %89 : vector<8x1xf32>
      %91 = math.absf %88 : vector<8x1xf32>
      %cst_30 = arith.constant 0.000000e+00 : f32
      %92 = vector.broadcast %cst_30 : f32 to vector<8x1xf32>
      %93 = arith.subf %92, %91 : vector<8x1xf32>
      %94 = math.exp %93 : vector<8x1xf32>
      %cst_31 = arith.constant 1.000000e+00 : f32
      %95 = vector.broadcast %cst_31 : f32 to vector<8x1xf32>
      %96 = arith.addf %95, %94 : vector<8x1xf32>
      %97 = math.log %96 : vector<8x1xf32>
      %98 = arith.addf %90, %97 : vector<8x1xf32>
      %99 = arith.mulf %29, %98 : vector<8x1xf32>
      %100 = vector.shape_cast %99 : vector<8x1xf32> to vector<1x8x1xf32>
      %cst_32 = arith.constant dense<0.000000e+00> : vector<1xf32>
      %101 = vector.multi_reduction <add>, %100, %cst_32 [1, 2] : vector<1x8x1xf32> to vector<1xf32>
      %102 = vector.shape_cast %101 : vector<1xf32> to vector<1x1x1xf32>
      %103 = vector.extract %102[0, 0, 0] : f32 from vector<1x1x1xf32>
      %104 = vector.extract_strided_slice %27 {offsets = [0, 5], sizes = [8, 3], strides = [1, 1]} : vector<8x8xf32> to vector<8x3xf32>
      %105 = vector.extract_strided_slice %28 {offsets = [0, 5], sizes = [8, 3], strides = [1, 1]} : vector<8x8xf32> to vector<8x3xf32>
      %cst_33 = arith.constant 0.000000e+00 : f32
      %106 = vector.broadcast %cst_33 : f32 to vector<8x3xf32>
      %107 = arith.maximumf %104, %106 : vector<8x3xf32>
      %108 = math.absf %104 : vector<8x3xf32>
      %cst_34 = arith.constant 0.000000e+00 : f32
      %109 = vector.broadcast %cst_34 : f32 to vector<8x3xf32>
      %110 = arith.subf %109, %108 : vector<8x3xf32>
      %111 = math.exp %110 : vector<8x3xf32>
      %cst_35 = arith.constant 1.000000e+00 : f32
      %112 = vector.broadcast %cst_35 : f32 to vector<8x3xf32>
      %113 = arith.addf %112, %111 : vector<8x3xf32>
      %114 = math.log %113 : vector<8x3xf32>
      %115 = arith.addf %107, %114 : vector<8x3xf32>
      %116 = arith.mulf %104, %105 : vector<8x3xf32>
      %117 = arith.subf %115, %116 : vector<8x3xf32>
      %118 = vector.broadcast %29 : vector<8x1xf32> to vector<8x3xf32>
      %119 = arith.mulf %118, %117 : vector<8x3xf32>
      %120 = vector.shape_cast %119 : vector<8x3xf32> to vector<1x8x3xf32>
      %cst_36 = arith.constant dense<0.000000e+00> : vector<1xf32>
      %121 = vector.multi_reduction <add>, %120, %cst_36 [1, 2] : vector<1x8x3xf32> to vector<1xf32>
      %122 = vector.shape_cast %121 : vector<1xf32> to vector<1x1x1xf32>
      %123 = vector.extract %122[0, 0, 0] : f32 from vector<1x1x1xf32>
      %124 = vector.shape_cast %29 : vector<8x1xf32> to vector<1x8x1xf32>
      %cst_37 = arith.constant dense<0.000000e+00> : vector<1xf32>
      %125 = vector.multi_reduction <add>, %124, %cst_37 [1, 2] : vector<1x8x1xf32> to vector<1xf32>
      %126 = vector.shape_cast %125 : vector<1xf32> to vector<1x1x1xf32>
      %127 = vector.extract %126[0, 0, 0] : f32 from vector<1x1x1xf32>
      %cst_38 = arith.constant 1.000000e+00 : f32
      %128 = arith.maximumf %127, %cst_38 : f32
      %c0_39 = arith.constant 0 : index
      %c0_40 = arith.constant 0 : index
      %129 = vector.load %arg4[%c0_39, %c0_40] : memref<2x8xf32, #tpu.memory_space<vmem>>, vector<1x8xf32>
      %c1 = arith.constant 1 : index
      %c0_41 = arith.constant 0 : index
      %130 = vector.load %arg4[%c1, %c0_41] : memref<2x8xf32, #tpu.memory_space<vmem>>, vector<1x8xf32>
      %cst_42 = arith.constant 0.000000e+00 : f32
      %131 = vector.broadcast %cst_42 : f32 to vector<1x8xf32>
      %132 = arith.maximumf %129, %131 : vector<1x8xf32>
      %133 = math.absf %129 : vector<1x8xf32>
      %cst_43 = arith.constant 0.000000e+00 : f32
      %134 = vector.broadcast %cst_43 : f32 to vector<1x8xf32>
      %135 = arith.subf %134, %133 : vector<1x8xf32>
      %136 = math.exp %135 : vector<1x8xf32>
      %cst_44 = arith.constant 1.000000e+00 : f32
      %137 = vector.broadcast %cst_44 : f32 to vector<1x8xf32>
      %138 = arith.addf %137, %136 : vector<1x8xf32>
      %139 = math.log %138 : vector<1x8xf32>
      %140 = arith.addf %132, %139 : vector<1x8xf32>
      %141 = arith.mulf %130, %140 : vector<1x8xf32>
      %142 = vector.shape_cast %141 : vector<1x8xf32> to vector<1x1x8xf32>
      %cst_45 = arith.constant dense<0.000000e+00> : vector<1xf32>
      %143 = vector.multi_reduction <add>, %142, %cst_45 [1, 2] : vector<1x1x8xf32> to vector<1xf32>
      %144 = vector.shape_cast %143 : vector<1xf32> to vector<1x1x1xf32>
      %145 = vector.extract %144[0, 0, 0] : f32 from vector<1x1x1xf32>
      %146 = arith.subf %26, %145 : f32
      %147 = vector.shape_cast %130 : vector<1x8xf32> to vector<1x1x8xf32>
      %cst_46 = arith.constant dense<0.000000e+00> : vector<1xf32>
      %148 = vector.multi_reduction <add>, %147, %cst_46 [1, 2] : vector<1x1x8xf32> to vector<1xf32>
      %149 = vector.shape_cast %148 : vector<1xf32> to vector<1x1x1xf32>
      %150 = vector.extract %149[0, 0, 0] : f32 from vector<1x1x1xf32>
      %cst_47 = arith.constant 1.536000e+03 : f32
      %151 = arith.subf %cst_47, %150 : f32
      %cst_48 = arith.constant 1.000000e+00 : f32
      %152 = arith.maximumf %151, %cst_48 : f32
      %cst_49 = arith.constant 1.536000e+03 : f32
      %153 = arith.divf %55, %cst_49 : f32
      %154 = arith.divf %153, %128 : f32
      %cst_50 = arith.constant 1.536000e+03 : f32
      %155 = arith.divf %72, %cst_50 : f32
      %156 = arith.divf %155, %128 : f32
      %cst_51 = arith.constant 1.536000e+03 : f32
      %157 = arith.divf %79, %cst_51 : f32
      %158 = arith.divf %157, %128 : f32
      %cst_52 = arith.constant 1.536000e+03 : f32
      %159 = arith.divf %86, %cst_52 : f32
      %160 = arith.divf %159, %128 : f32
      %cst_53 = arith.constant 1.536000e+03 : f32
      %161 = arith.divf %103, %cst_53 : f32
      %162 = arith.divf %161, %128 : f32
      %cst_54 = arith.constant 5.000000e-01 : f32
      %163 = arith.mulf %cst_54, %146 : f32
      %cst_55 = arith.constant 1.536000e+03 : f32
      %164 = arith.divf %163, %cst_55 : f32
      %165 = arith.divf %164, %152 : f32
      %166 = arith.addf %162, %165 : f32
      %cst_56 = arith.constant 3.000000e+00 : f32
      %167 = arith.mulf %128, %cst_56 : f32
      %168 = arith.divf %123, %167 : f32
      %169 = arith.divf %168, %128 : f32
      %170 = arith.addf %154, %156 : f32
      %cst_57 = arith.constant 2.500000e+00 : f32
      %171 = arith.mulf %170, %cst_57 : f32
      %172 = arith.addf %158, %160 : f32
      %cst_58 = arith.constant 2.500000e+00 : f32
      %173 = arith.mulf %172, %cst_58 : f32
      %174 = arith.addf %171, %173 : f32
      %cst_59 = arith.constant 1.000000e+00 : f32
      %175 = arith.mulf %166, %cst_59 : f32
      %176 = arith.addf %174, %175 : f32
      %cst_60 = arith.constant 1.000000e+00 : f32
      %177 = arith.mulf %169, %cst_60 : f32
      %178 = arith.addf %176, %177 : f32
      %c0_61 = arith.constant 0 : index
      %179 = memref.load %arg5[%c0_61] : memref<8xf32, #tpu.memory_space<smem>>
      memref.store %178, %arg5[%c0_61] : memref<8xf32, #tpu.memory_space<smem>>
      %c1_62 = arith.constant 1 : index
      %180 = memref.load %arg5[%c1_62] : memref<8xf32, #tpu.memory_space<smem>>
      memref.store %154, %arg5[%c1_62] : memref<8xf32, #tpu.memory_space<smem>>
      %c2 = arith.constant 2 : index
      %181 = memref.load %arg5[%c2] : memref<8xf32, #tpu.memory_space<smem>>
      memref.store %156, %arg5[%c2] : memref<8xf32, #tpu.memory_space<smem>>
      %c3 = arith.constant 3 : index
      %182 = memref.load %arg5[%c3] : memref<8xf32, #tpu.memory_space<smem>>
      memref.store %158, %arg5[%c3] : memref<8xf32, #tpu.memory_space<smem>>
      %c4 = arith.constant 4 : index
      %183 = memref.load %arg5[%c4] : memref<8xf32, #tpu.memory_space<smem>>
      memref.store %160, %arg5[%c4] : memref<8xf32, #tpu.memory_space<smem>>
      %c5 = arith.constant 5 : index
      %184 = memref.load %arg5[%c5] : memref<8xf32, #tpu.memory_space<smem>>
      memref.store %166, %arg5[%c5] : memref<8xf32, #tpu.memory_space<smem>>
      %c6 = arith.constant 6 : index
      %185 = memref.load %arg5[%c6] : memref<8xf32, #tpu.memory_space<smem>>
      memref.store %169, %arg5[%c6] : memref<8xf32, #tpu.memory_space<smem>>
      %cst_63 = arith.constant 0.000000e+00 : f32
      %c7 = arith.constant 7 : index
      %186 = memref.load %arg5[%c7] : memref<8xf32, #tpu.memory_space<smem>>
      memref.store %cst_63, %arg5[%c7] : memref<8xf32, #tpu.memory_space<smem>>
    } else {
    }
    return
  }
  func.func @transform_0(%arg0: i32) -> (i32, i32) {
    %c0_i32 = arith.constant 0 : i32
    %c0_i32_0 = arith.constant 0 : i32
    return %arg0, %c0_i32 : i32, i32
  }
  func.func @transform_1(%arg0: i32) -> (i32, i32) {
    %c0_i32 = arith.constant 0 : i32
    %c0_i32_0 = arith.constant 0 : i32
    %c0_i32_1 = arith.constant 0 : i32
    return %c0_i32, %c0_i32_0 : i32, i32
  }
  func.func @transform_2(%arg0: i32) -> (i32, i32) {
    %c0_i32 = arith.constant 0 : i32
    %c0_i32_0 = arith.constant 0 : i32
    %c0_i32_1 = arith.constant 0 : i32
    return %c0_i32, %c0_i32_0 : i32, i32
  }
  func.func @transform_3(%arg0: i32) -> (i32, i32) {
    %c0_i32 = arith.constant 0 : i32
    %c0_i32_0 = arith.constant 0 : i32
    %c0_i32_1 = arith.constant 0 : i32
    return %c0_i32, %c0_i32_0 : i32, i32
  }
  func.func @transform_4(%arg0: i32) -> i32 {
    %c0_i32 = arith.constant 0 : i32
    %c0_i32_0 = arith.constant 0 : i32
    return %c0_i32 : i32
  }
}

</mosaic_0001>

<llo_original>
// kernel: squeeze.1
$region0: #{squeeze.1}
  %s0 = inlined_call_operand.vmem [shape: f32[2,3,1,16,16], index: 0, kind: input, shape index: {}]
  %s1 = inlined_call_operand.vmem [shape: f32[1536], index: 1, kind: output, shape index: {}]
  %v2 = vld [vmem:[%s0] ss:$8 sm:$0xf]
  %v3 = vld [vmem:[%s0] ss:$8 sm:$0xf0]
  %vm4 = vcmask 1047556
  %v5 = vsel %vm4, %v3, %v2
  %vm6 = vcmask 130048
  %7 = vst.msk [vmem:[%s1] sm:$0xff] %vm6, %v5
  %s8 = scalar_lea.vmem %s0, 64
  %v9 = vld [vmem:[%s8] ss:$8 sm:$0xf]
  %vm10 = vcmask 130048
  %s11 = scalar_lea.vmem %s1, 8
  %12 = vst.msk [vmem:[%s11] sm:$0xf] %vm10, %v9
  %s13 = scalar_lea.vmem %s0, 7
  %v14 = vld [vmem:[%s13] ss:$8 sm:$0xf]
  %s15 = scalar_lea.vmem %s0, 7
  %v16 = vld [vmem:[%s15] ss:$8 sm:$0xf0]
  %vm17 = vcmask 1047556
  %v18 = vsel %vm17, %v16, %v14
  %19 = vrot.lane.b32.xlu0 %v18, 112
  %v20 = vpop.permute.xlu0 %19
  %vm21 = vcmask 1048448
  %22 = vst.msk [vmem:[%s1] sm:$0xff] %vm21, %v20
  %s23 = scalar_lea.vmem %s0, 71
  %v24 = vld [vmem:[%s23] ss:$8 sm:$0xf]
  %25 = vrot.lane.b32.xlu0 %v24, 112
  %v26 = vpop.permute.xlu0 %25
  %vm27 = vcmask 1048448
  %s28 = scalar_lea.vmem %s1, 8
  %29 = vst.msk [vmem:[%s28] sm:$0xf] %vm27, %v26
  %s30 = scalar_lea.vmem %s0, 6
  %v31 = vld [vmem:[%s30] ss:$8 sm:$0xf]
  %s32 = scalar_lea.vmem %s0, 6
  %v33 = vld [vmem:[%s32] ss:$8 sm:$0xf0]
  %vm34 = vcmask 1047556
  %v35 = vsel %vm34, %v33, %v31
  %36 = vrot.lane.b32.xlu0 %v35, 96
  %v37 = vpop.permute.xlu0 %36
  %vm38 = vcmask 917248
  %39 = vst.msk [vmem:[%s1] sm:$0xff] %vm38, %v37
  %s40 = scalar_lea.vmem %s0, 70
  %v41 = vld [vmem:[%s40] ss:$8 sm:$0xf]
  %42 = vrot.lane.b32.xlu0 %v41, 96
  %v43 = vpop.permute.xlu0 %42
  %vm44 = vcmask 917248
  %s45 = scalar_lea.vmem %s1, 8
  %46 = vst.msk [vmem:[%s45] sm:$0xf] %vm44, %v43
  %s47 = scalar_lea.vmem %s0, 5
  %v48 = vld [vmem:[%s47] ss:$8 sm:$0xf]
  %s49 = scalar_lea.vmem %s0, 5
  %v50 = vld [vmem:[%s49] ss:$8 sm:$0xf0]
  %vm51 = vcmask 1047556
  %v52 = vsel %vm51, %v50, %v48
  %53 = vrot.lane.b32.xlu0 %v52, 80
  %v54 = vpop.permute.xlu0 %53
  %vm55 = vcmask 786048
  %56 = vst.msk [vmem:[%s1] sm:$0xff] %vm55, %v54
  %s57 = scalar_lea.vmem %s0, 69
  %v58 = vld [vmem:[%s57] ss:$8 sm:$0xf]
  %59 = vrot.lane.b32.xlu0 %v58, 80
  %v60 = vpop.permute.xlu0 %59
  %vm61 = vcmask 786048
  %s62 = scalar_lea.vmem %s1, 8
  %63 = vst.msk [vmem:[%s62] sm:$0xf] %vm61, %v60
  %s64 = scalar_lea.vmem %s0, 4
  %v65 = vld [vmem:[%s64] ss:$8 sm:$0xf]
  %s66 = scalar_lea.vmem %s0, 4
  %v67 = vld [vmem:[%s66] ss:$8 sm:$0xf0]
  %vm68 = vcmask 1047556
  %v69 = vsel %vm68, %v67, %v65
  %70 = vrot.lane.b32.xlu0 %v69, 64
  %v71 = vpop.permute.xlu0 %70
  %vm72 = vcmask 654848
  %73 = vst.msk [vmem:[%s1] sm:$0xff] %vm72, %v71
  %s74 = scalar_lea.vmem %s0, 68
  %v75 = vld [vmem:[%s74] ss:$8 sm:$0xf]
  %76 = vrot.lane.b32.xlu0 %v75, 64
  %v77 = vpop.permute.xlu0 %76
  %vm78 = vcmask 654848
  %s79 = scalar_lea.vmem %s1, 8
  %80 = vst.msk [vmem:[%s79] sm:$0xf] %vm78, %v77
  %s81 = scalar_lea.vmem %s0, 3
  %v82 = vld [vmem:[%s81] ss:$8 sm:$0xf]
  %s83 = scalar_lea.vmem %s0, 3
  %v84 = vld [vmem:[%s83] ss:$8 sm:$0xf0]
  %vm85 = vcmask 1047556
  %v86 = vsel %vm85, %v84, %v82
  %87 = vrot.lane.b32.xlu0 %v86, 48
  %v88 = vpop.permute.xlu0 %87
  %vm89 = vcmask 523648
  %90 = vst.msk [vmem:[%s1] sm:$0xff] %vm89, %v88
  %s91 = scalar_lea.vmem %s0, 67
  %v92 = vld [vmem:[%s91] ss:$8 sm:$0xf]
  %93 = vrot.lane.b32.xlu0 %v92, 48
  %v94 = vpop.permute.xlu0 %93
  %vm95 = vcmask 523648
  %s96 = scalar_lea.vmem %s1, 8
  %97 = vst.msk [vmem:[%s96] sm:$0xf] %vm95, %v94
  %s98 = scalar_lea.vmem %s0, 2
  %v99 = vld [vmem:[%s98] ss:$8 sm:$0xf]
  %s100 = scalar_lea.vmem %s0, 2
  %v101 = vld [vmem:[%s100] ss:$8 sm:$0xf0]
  %vm102 = vcmask 1047556
  %v103 = vsel %vm102, %v101, %v99
  %104 = vrot.lane.b32.xlu0 %v103, 32
  %v105 = vpop.permute.xlu0 %104
  %vm106 = vcmask 392448
  %107 = vst.msk [vmem:[%s1] sm:$0xff] %vm106, %v105
  %s108 = scalar_lea.vmem %s0, 66
  %v109 = vld [vmem:[%s108] ss:$8 sm:$0xf]
  %110 = vrot.lane.b32.xlu0 %v109, 32
  %v111 = vpop.permute.xlu0 %110
  %vm112 = vcmask 392448
  %s113 = scalar_lea.vmem %s1, 8
  %114 = vst.msk [vmem:[%s113] sm:$0xf] %vm112, %v111
  %s115 = scalar_lea.vmem %s0, 1
  %v116 = vld [vmem:[%s115] ss:$8 sm:$0xf]
  %s117 = scalar_lea.vmem %s0, 1
  %v118 = vld [vmem:[%s117] ss:$8 sm:$0xf0]
  %vm119 = vcmask 1047556
  %v120 = vsel %vm119, %v118, %v116
  %121 = vrot.lane.b32.xlu0 %v120, 16
  %v122 = vpop.permute.xlu0 %121
  %vm123 = vcmask 261248
  %124 = vst.msk [vmem:[%s1] sm:$0xff] %vm123, %v122
  %s125 = scalar_lea.vmem %s0, 65
  %v126 = vld [vmem:[%s125] ss:$8 sm:$0xf]
  %127 = vrot.lane.b32.xlu0 %v126, 16
  %v128 = vpop.permute.xlu0 %127
  %vm129 = vcmask 261248
  %s130 = scalar_lea.vmem %s1, 8
  %131 = vst.msk [vmem:[%s130] sm:$0xf] %vm129, %v128

// kernel: yolo_loss_forward.1
$region0: #{yolo_loss_forward.1}
  #allocation0 [shape = 'u32[]', space=smem, size = 0x4, offset = 0x4, fixed_abs, tag = 'smem constant byte address 0x4 - core index']
  #allocation1 [shape = 'u32[144,128]{1,0:T(1,128)}', space=vmem, size = 0x12000, scoped, tag = 'internal scratch']
  #allocation2 [shape = 'f32[8,128]{1,0:T(8,128)}', space=vmem, size = 0x1000, scoped, tag = 'scratch operand']
  %s0 = inlined_call_operand.vmem [shape: f32[16,128], index: 0, kind: input, shape index: {}]
  %s1 = inlined_call_operand.vmem [shape: f32[8,8], index: 1, kind: input, shape index: {}]
  %s2 = inlined_call_operand.vmem [shape: f32[8,8], index: 2, kind: input, shape index: {}]
  %s3 = inlined_call_operand.vmem [shape: f32[2,8], index: 3, kind: input, shape index: {}]
  %s4 = inlined_call_operand.hbm [shape: f32[8], index: 4, kind: output, shape index: {}]
  %s5 = sld [smem:[#allocation0]]
  $region34: #{yolo_loss_forward.1} parent=0
    _
  %s7 = ssub.s32 1, %s5
  %s8 = scalar_select 0, %s7, %s5
  $region1: #{yolo_loss_forward.1} parent=0
    #allocation3 [shape = 'u8[512]{0}', space=smem, size = 0x200, scoped, tag = 'output window, operand 0, single buffered']
    #allocation4 [shape = 's32[1]{0}', space=sflag, size = 0x4, scoped, tag = 'scoped memory for yolo_loss_forward.1']
    %9 = vsyncpa [#allocation4], 0
    // Predicated region
    $region2: #{yolo_loss_forward.1} parent=1 // pred_check
      _
    $region3: #{yolo_loss_forward.1} parent=1 // pred_check_branch
      %11 = sbr.rel (0) target = $region5
    $region4: #{yolo_loss_forward.1} parent=1 // pred_region
      _
    $region5: #{yolo_loss_forward.1} parent=1 // pred_fallthru
      _
    // Predicated region
    $region6: #{yolo_loss_forward.1} parent=1 // pred_check
      _
    $region7: #{yolo_loss_forward.1} parent=1 // pred_check_branch
      %13 = sbr.rel (0) target = $region9
    $region8: #{yolo_loss_forward.1} parent=1 // pred_region
      _
    $region9: #{yolo_loss_forward.1} parent=1 // pred_fallthru
      _
    // Predicated region
    $region10: #{yolo_loss_forward.1} parent=1 // pred_check
      _
    $region11: #{yolo_loss_forward.1} parent=1 // pred_check_branch
      %15 = sbr.rel (0) target = $region13
    $region12: #{yolo_loss_forward.1} parent=1 // pred_region
      _
    $region13: #{yolo_loss_forward.1} parent=1 // pred_fallthru
      _
    // Predicated region
    $region14: #{yolo_loss_forward.1} parent=1 // pred_check
      _
    $region15: #{yolo_loss_forward.1} parent=1 // pred_check_branch
      %17 = sbr.rel (0) target = $region17
    $region16: #{yolo_loss_forward.1} parent=1 // pred_region
      _
    $region17: #{yolo_loss_forward.1} parent=1 // pred_fallthru
      _
    %p18 = scmp.eq.s32.totalorder 0, 0
    // Predicated region
    $region18: #{yolo_loss_forward.1} parent=1 // pred_check
      %p19 = pneg %p18
    $region19: #{yolo_loss_forward.1} parent=1 // pred_check_branch
      %21 = sbr.rel (%p19) target = $region21
    $region20: #{yolo_loss_forward.1} parent=1 // pred_region
      %22 = vst [vmem:[#allocation2] sm:$0xff] 0.0
    $region21: #{yolo_loss_forward.1} parent=1 // pred_fallthru
      _
    %v23 = vld [vmem:[%s0] sm:$0xff]
    %v24 = vld [vmem:[%s0 + $0x8] sm:$0xff]
    %v25 = vmax.f32 %v23, 0.0
    %v26 = vmax.f32 %v24, 0.0
    %v27 = vand.u32 2147483647, %v23
    %v28 = vand.u32 2147483647, %v24
    %v29 = vsub.f32 0.0, %v27
    %v30 = vsub.f32 0.0, %v28
    %v31 = vmul.f32 %v29, 1.442695
    %v32 = vpow.pop %v31
    %v33 = vmul.f32 %v30, 1.442695
    %v34 = vpow.pop %v33
    %v35 = vadd.f32 %v32, 1.0
    %v36 = vadd.f32 %v34, 1.0
    %v37 = vlog2.pop %v35
    %v38 = vmul.f32 %v37, 0.6931472
    %v39 = vlog2.pop %v36
    %v40 = vmul.f32 %v39, 0.6931472
    %v41 = vadd.f32 %v25, %v38
    %v42 = vadd.f32 %v26, %v40
    %v43 = vadd.f32 %v41, %v42
    %v44 = vld [vmem:[#allocation2] sm:$0xff]
    %v45 = vadd.f32 %v44, %v43
    %46 = vst [vmem:[#allocation2] sm:$0xff] %v45
    // Predicated region
    $region22: #{yolo_loss_forward.1} parent=1 // pred_check
      %p47 = pneg %p18
    $region23: #{yolo_loss_forward.1} parent=1 // pred_check_branch
      %49 = sbr.rel (%p47) target = $region25
    $region24: #{yolo_loss_forward.1} parent=1 // pred_region
      %v50 = vld [vmem:[#allocation2] sm:$0xff]
      %51 = vadd.xlane.f32.xlu0 %v50
      %v52 = vpop.xlane.xlu0 %51
      %v53 = vrot.slane %v52, 4
      %v54 = vadd.f32 %v52, %v53
      %v55 = vrot.slane %v54, 2
      %v56 = vadd.f32 %v54, %v55
      %v57 = vrot.slane %v56, 1
      %v58 = vadd.f32 %v56, %v57
      %s59 = vtos %v58
      %v60 = vld [vmem:[%s1] sm:$0xff]
      %v61 = vld [vmem:[%s2] sm:$0xff]
      %v62 = vmax.f32 %v60, 0.0
      %v63 = vand.u32 2147483647, %v60
      %v64 = vsub.f32 0.0, %v63
      %v65 = vmul.f32 %v64, 1.442695
      %v66 = vpow.pop %v65
      %v67 = vadd.f32 %v66, 1.0
      %v68 = vlog2.pop %v67
      %v69 = vmul.f32 %v68, 0.6931472
      %v70 = vadd.f32 %v62, %v69
      %72 = vrot.lane.b32.xlu0 %v61, 127
      %v73 = vpop.permute.xlu0 %72
      %v75 = vmul.f32 %v60, %v73
      %v76 = vsub.f32 %v70, %v75
      %v77 = vmul.f32 %v61, %v76
      %vm78 = vcmask 7168
      %v79 = vsel %vm78, %v77, 0.0
      %80 = vadd.xlane.f32.xlu0 %v79
      %v81 = vpop.xlane.xlu0 %80
      %v82 = vrot.slane %v81, 4
      %v83 = vadd.f32 %v81, %v82
      %v84 = vrot.slane %v83, 2
      %v85 = vadd.f32 %v83, %v84
      %v86 = vrot.slane %v85, 1
      %v87 = vadd.f32 %v85, %v86
      %s88 = vtos %v87
      %90 = vrot.lane.b32.xlu0 %v76, 127
      %v91 = vpop.permute.xlu0 %90
      %v93 = vmul.f32 %v61, %v91
      %v94 = vsel %vm78, %v93, 0.0
      %95 = vadd.xlane.f32.xlu0 %v94
      %v96 = vpop.xlane.xlu0 %95
      %v97 = vrot.slane %v96, 4
      %v98 = vadd.f32 %v96, %v97
      %v99 = vrot.slane %v98, 2
      %v100 = vadd.f32 %v98, %v99
      %v101 = vrot.slane %v100, 1
      %v102 = vadd.f32 %v100, %v101
      %s103 = vtos %v102
      %v104 = vsub.f32 %v60, %v73
      %v105 = vmul.f32 %v104, %v104
      %107 = vrot.lane.b32.xlu0 %v105, 126
      %v108 = vpop.permute.xlu0 %107
      %v110 = vmul.f32 %v61, %v108
      %v111 = vsel %vm78, %v110, 0.0
      %112 = vadd.xlane.f32.xlu0 %v111
      %v113 = vpop.xlane.xlu0 %112
      %v114 = vrot.slane %v113, 4
      %v115 = vadd.f32 %v113, %v114
      %v116 = vrot.slane %v115, 2
      %v117 = vadd.f32 %v115, %v116
      %v118 = vrot.slane %v117, 1
      %v119 = vadd.f32 %v117, %v118
      %s120 = vtos %v119
      %121 = vrot.lane.b32.xlu0 %v105, 125
      %v122 = vpop.permute.xlu0 %121
      %v124 = vmul.f32 %v61, %v122
      %v125 = vsel %vm78, %v124, 0.0
      %126 = vadd.xlane.f32.xlu0 %v125
      %v127 = vpop.xlane.xlu0 %126
      %v128 = vrot.slane %v127, 4
      %v129 = vadd.f32 %v127, %v128
      %v130 = vrot.slane %v129, 2
      %v131 = vadd.f32 %v129, %v130
      %v132 = vrot.slane %v131, 1
      %v133 = vadd.f32 %v131, %v132
      %s134 = vtos %v133
      %v135 = vsub.f32 0.0, %v60
      %v136 = vmax.f32 %v135, 0.0
      %v137 = vand.u32 2147483647, %v135
      %v138 = vsub.f32 0.0, %v137
      %v139 = vmul.f32 %v138, 1.442695
      %v140 = vpow.pop %v139
      %v141 = vadd.f32 %v140, 1.0
      %v142 = vlog2.pop %v141
      %v143 = vmul.f32 %v142, 0.6931472
      %v144 = vadd.f32 %v136, %v143
      %146 = vrot.lane.b32.xlu0 %v144, 124
      %v147 = vpop.permute.xlu0 %146
      %v149 = vmul.f32 %v61, %v147
      %v150 = vsel %vm78, %v149, 0.0
      %151 = vadd.xlane.f32.xlu0 %v150
      %v152 = vpop.xlane.xlu0 %151
      %v153 = vrot.slane %v152, 4
      %v154 = vadd.f32 %v152, %v153
      %v155 = vrot.slane %v154, 2
      %v156 = vadd.f32 %v154, %v155
      %v157 = vrot.slane %v156, 1
      %v158 = vadd.f32 %v156, %v157
      %s159 = vtos %v158
      %v160 = vmul.f32 %v60, %v61
      %v161 = vsub.f32 %v70, %v160
      %162 = vset.pattern.permute.xlu0 0
      %163 = vperm.xlu0 %162, %v61
      %v164 = vpop.permute.xlu0 %163
      %v166 = vmul.f32 %v164, %v161
      %168 = vrot.lane.b32.xlu0 %v166, 123
      %v169 = vpop.permute.xlu0 %168
      %vm171 = vcmask 23552
      %v172 = vsel %vm171, %v169, 0.0
      %173 = vadd.xlane.f32.xlu0 %v172
      %v174 = vpop.xlane.xlu0 %173
      %v175 = vrot.slane %v174, 4
      %v176 = vadd.f32 %v174, %v175
      %v177 = vrot.slane %v176, 2
      %v178 = vadd.f32 %v176, %v177
      %v179 = vrot.slane %v178, 1
      %v180 = vadd.f32 %v178, %v179
      %s181 = vtos %v180
      %v182 = vsel %vm78, %v61, 0.0
      %183 = vadd.xlane.f32.xlu0 %v182
      %v184 = vpop.xlane.xlu0 %183
      %v185 = vrot.slane %v184, 4
      %v186 = vadd.f32 %v184, %v185
      %v187 = vrot.slane %v186, 2
      %v188 = vadd.f32 %v186, %v187
      %v189 = vrot.slane %v188, 1
      %v190 = vadd.f32 %v188, %v189
      %s191 = vtos %v190
      %s192 = smax.f32 %s191, 1.0
      %v193 = vld [vmem:[%s3] sm:$0x1]
      %v194 = vld [vmem:[%s3 + $0x1] sm:$0x1]
      %v195 = vmax.f32 %v193, 0.0
      %v196 = vand.u32 2147483647, %v193
      %v197 = vsub.f32 0.0, %v196
      %v198 = vmul.f32 %v197, 1.442695
      %v199 = vpow.pop %v198
      %v200 = vadd.f32 %v199, 1.0
      %v201 = vlog2.pop %v200
      %v202 = vmul.f32 %v201, 0.6931472
      %v203 = vadd.f32 %v195, %v202
      %v204 = vmul.f32 %v194, %v203
      %vm205 = vcmask 57344
      %v206 = vsel %vm205, %v204, 0.0
      %207 = vadd.xlane.f32.xlu0 %v206
      %v208 = vpop.xlane.xlu0 %207
      %v209 = vrot.slane %v208, 4
      %v210 = vadd.f32 %v208, %v209
      %v211 = vrot.slane %v210, 2
      %v212 = vadd.f32 %v210, %v211
      %v213 = vrot.slane %v212, 1
      %v214 = vadd.f32 %v212, %v213
      %s215 = vtos %v214
      %s216 = ssub.f32 %s59, %s215
      %v217 = vsel %vm205, %v194, 0.0
      %218 = vadd.xlane.f32.xlu0 %v217
      %v219 = vpop.xlane.xlu0 %218
      %v220 = vrot.slane %v219, 4
      %v221 = vadd.f32 %v219, %v220
      %v222 = vrot.slane %v221, 2
      %v223 = vadd.f32 %v221, %v222
      %v224 = vrot.slane %v223, 1
      %v225 = vadd.f32 %v223, %v224
      %s226 = vtos %v225
      %s227 = ssub.f32 1536.0, %s226
      %s228 = smax.f32 %s227, 1.0
      %v229 = vrcp.pop 1536.0
      %s230 = vtos %v229
      %s231 = smul.f32 %s88, %s230
      %v232 = vstv %s192
      %v233 = vrcp.pop %v232
      %s234 = vtos %v233
      %s235 = smul.f32 %s231, %s234
      %v236 = vrcp.pop 1536.0
      %s237 = vtos %v236
      %s238 = smul.f32 %s103, %s237
      %v239 = vstv %s192
      %v240 = vrcp.pop %v239
      %s241 = vtos %v240
      %s242 = smul.f32 %s238, %s241
      %v243 = vrcp.pop 1536.0
      %s244 = vtos %v243
      %s245 = smul.f32 %s120, %s244
      %v246 = vstv %s192
      %v247 = vrcp.pop %v246
      %s248 = vtos %v247
      %s249 = smul.f32 %s245, %s248
      %v250 = vrcp.pop 1536.0
      %s251 = vtos %v250
      %s252 = smul.f32 %s134, %s251
      %v253 = vstv %s192
      %v254 = vrcp.pop %v253
      %s255 = vtos %v254
      %s256 = smul.f32 %s252, %s255
      %v257 = vrcp.pop 1536.0
      %s258 = vtos %v257
      %s259 = smul.f32 %s159, %s258
      %v260 = vstv %s192
      %v261 = vrcp.pop %v260
      %s262 = vtos %v261
      %s263 = smul.f32 %s259, %s262
      %s264 = smul.f32 %s216, 0.5
      %v265 = vrcp.pop 1536.0
      %s266 = vtos %v265
      %s267 = smul.f32 %s264, %s266
      %v268 = vstv %s228
      %v269 = vrcp.pop %v268
      %s270 = vtos %v269
      %s271 = smul.f32 %s267, %s270
      %s272 = sadd.f32 %s263, %s271
      %s273 = smul.f32 %s192, 3.0
      %v274 = vstv %s273
      %v275 = vrcp.pop %v274
      %s276 = vtos %v275
      %s277 = smul.f32 %s181, %s276
      %v278 = vstv %s192
      %v279 = vrcp.pop %v278
      %s280 = vtos %v279
      %s281 = smul.f32 %s277, %s280
      %s282 = sadd.f32 %s235, %s242
      %s283 = smul.f32 %s282, 2.5
      %s284 = sadd.f32 %s249, %s256
      %s285 = smul.f32 %s284, 2.5
      %s286 = sadd.f32 %s283, %s285
      %s287 = sadd.f32 %s286, %s272
      %s288 = sadd.f32 %s287, %s281
      %s289 = scalar_lea.smem [#allocation3], 0
      %290 = sst [smem:[%s289]] %s288
      %s291 = scalar_lea.smem [#allocation3], 1
      %292 = sst [smem:[%s291]] %s235
      %s293 = scalar_lea.smem [#allocation3], 2
      %294 = sst [smem:[%s293]] %s242
      %s295 = scalar_lea.smem [#allocation3], 3
      %296 = sst [smem:[%s295]] %s249
      %s297 = scalar_lea.smem [#allocation3], 4
      %298 = sst [smem:[%s297]] %s256
      %s299 = scalar_lea.smem [#allocation3], 5
      %300 = sst [smem:[%s299]] %s272
      %s301 = scalar_lea.smem [#allocation3], 6
      %302 = sst [smem:[%s301]] %s281
      %s303 = scalar_lea.smem [#allocation3], 7
      %304 = sst [smem:[%s303]] 0.0
    $region25: #{yolo_loss_forward.1} parent=1 // pred_fallthru
      _
    // Predicated region
    $region26: #{yolo_loss_forward.1} parent=1 // pred_check
      _
    $region27: #{yolo_loss_forward.1} parent=1 // pred_check_branch
      %306 = sbr.rel (0) target = $region29
    $region28: #{yolo_loss_forward.1} parent=1 // pred_region
      %s308 = ssub.s32 16, 16
      %309 = vsyncadd [#allocation4], %s308
      %312 = dma.smem_to_hbm [#allocation3], 16, %s4, [#allocation4]
    $region29: #{yolo_loss_forward.1} parent=1 // pred_fallthru
      _
    // Predicated region
    $region30: #{yolo_loss_forward.1} parent=1 // pred_check
      _
    $region31: #{yolo_loss_forward.1} parent=1 // pred_check_branch
      %314 = sbr.rel (0) target = $region33
    $region32: #{yolo_loss_forward.1} parent=1 // pred_region
      %315 = dma.done [#allocation4], 16
    $region33: #{yolo_loss_forward.1} parent=1 // pred_fallthru
      _
    %316 = sfence
    %317 = vsyncpa [#allocation4], 1

</llo_original>
